<compile_context>
chip_gen: v6e
topology: v6e:2x2x1
jax: 0.10.0
libtpu: 0.0.40
codegen_flags: <defaults>
</compile_context>

<pallas_src>
import jax
import jax.numpy as jnp
from jax.experimental import pallas as pl
from jax.experimental.pallas import tpu as pltpu


def _round_up(x, m):
    return ((x + m - 1) // m) * m


def policy_mlp_kernel(s_ref, g_ref, w1s_ref, w1g_ref, b1_ref, w2_ref, b2_ref,
                      w3_ref, b3_ref, loc_ref):
    # s_ref: (TB, state_dim)  g_ref: (TB, goal_dim)
    # w1s: (state_dim, H) bf16   w1g: (goal_dim, H) bf16
    # w2:  (H, H) bf16           w3:  (H, ac_pad) bf16
    # b1/b2: (1, H) f32          b3:  (1, ac_pad) f32
    s = s_ref[...].astype(jnp.bfloat16)
    g = g_ref[...].astype(jnp.bfloat16)

    # Layer 1 -- concat fused as two small bf16 matmuls against the split W1,
    # f32 accumulation on the MXU.
    h1 = (jnp.dot(s, w1s_ref[...], preferred_element_type=jnp.float32)
          + jnp.dot(g, w1g_ref[...], preferred_element_type=jnp.float32)
          + b1_ref[...])
    h1 = jnp.maximum(h1, 0.0).astype(jnp.bfloat16)

    # Layer 2 -- dominant (H, H) GEMM at native bf16 MXU rate, f32 accumulation.
    h2 = jnp.maximum(
        jnp.dot(h1, w2_ref[...], preferred_element_type=jnp.float32) + b2_ref[...],
        0.0).astype(jnp.bfloat16)

    # Layer 3 -- lane-padded (128-wide) output so the matmul and store are dense.
    out = jnp.dot(h2, w3_ref[...], preferred_element_type=jnp.float32) + b3_ref[...]
    loc_ref[...] = jnp.tanh(out).astype(loc_ref.dtype)


def _choose_tiling(B, max_tile_b=2048, min_split_b=512):
    """Pick (tile_b, num_tiles).

    Small batches: one tile covering the whole batch (block dim == full array
    dim, so no (8,128) padding issue and no HBM pad copy).  Large batches:
    >= 2 tiles (so v7x can shard the grid across both TensorCores), tile rows a
    multiple of 256 (matches the 2x256x256 MXU on v6e/v7x), capped at max_tile_b.
    """
    if B < min_split_b:
        return B, 1
    tile_b = min(max_tile_b, _round_up(-(-B // 2), 256))
    return tile_b, pl.cdiv(B, tile_b)


def policy_forward(state, goal, params, *, max_tile_b=2048):
    """Pallas implementation of Policy.forward.

    state: (B, state_dim), goal: (B, goal_dim)
    returns (loc: (B, ac_dim), scale: (ac_dim,)) -- the parameters of Normal(loc, scale).
    """
    # TODO(synk): torch.distributions.Normal itself has no Pallas equivalent; we
    # return (loc, scale), which fully parameterize it.
    w1s, w1g, b1, w2, b2, w3, b3, log_std = params
    B, state_dim = state.shape
    goal_dim = goal.shape[1]
    hidden = w2.shape[0]
    ac_pad = w3.shape[1]
    ac_dim = log_std.shape[0]

    tile_b, num_tiles = _choose_tiling(B, max_tile_b=max_tile_b)

    loc_pad = pl.pallas_call(
        policy_mlp_kernel,
        out_shape=jax.ShapeDtypeStruct((B, ac_pad), jnp.float32),
        grid=(num_tiles,),
        in_specs=[
            pl.BlockSpec((tile_b, state_dim), lambda i: (i, 0)),   # state tile
            pl.BlockSpec((tile_b, goal_dim), lambda i: (i, 0)),    # goal tile
            pl.BlockSpec((state_dim, hidden), lambda i: (0, 0)),   # W1_state (resident)
            pl.BlockSpec((goal_dim, hidden), lambda i: (0, 0)),    # W1_goal  (resident)
            pl.BlockSpec((1, hidden), lambda i: (0, 0)),           # b1
            pl.BlockSpec((hidden, hidden), lambda i: (0, 0)),      # W2       (resident)
            pl.BlockSpec((1, hidden), lambda i: (0, 0)),           # b2
            pl.BlockSpec((hidden, ac_pad), lambda i: (0, 0)),      # W3 (lane-padded)
            pl.BlockSpec((1, ac_pad), lambda i: (0, 0)),           # b3 (lane-padded)
        ],
        out_specs=pl.BlockSpec((tile_b, ac_pad), lambda i: (i, 0)),
        compiler_params=pltpu.CompilerParams(
            # Multi-tile batches shard across v7x's two TensorCores; a single
            # weight-DMA-bound step stays on one core.
            dimension_semantics=(("parallel",) if num_tiles > 1 else ("arbitrary",)),
        ),
    )(state, goal, w1s, w1g, b1, w2, b2, w3, b3)

    loc = loc_pad[:B, :ac_dim]
    scale = jnp.exp(log_std)   # parameter-only op; plain JAX glue
    return loc, scale


def init_params(key, state_dim, goal_dim, ac_dim, hidden=256,
                weight_dtype=jnp.bfloat16):
    """PyTorch-Linear-style init (U(+/-1/sqrt(fan_in))), stored as (in, out).

    W1 is split into (state, goal) halves for the fused concat, and the final
    layer is zero-padded to a lane-dense 128-wide output.  Weight matrices are
    stored in `weight_dtype` (bf16) -> native bf16 MXU feed + half the weight DMA.
    """
    d_in = state_dim + goal_dim
    ks = jax.random.split(key, 6)

    def unif(k, shape, fan_in):
        bound = 1.0 / jnp.sqrt(jnp.float32(fan_in))
        return jax.random.uniform(k, shape, jnp.float32, -bound, bound)

    w1 = unif(ks[0], (d_in, hidden), d_in)
    b1 = unif(ks[1], (1, hidden), d_in)
    w2 = unif(ks[2], (hidden, hidden), hidden)
    b2 = unif(ks[3], (1, hidden), hidden)
    w3 = unif(ks[4], (hidden, ac_dim), hidden)
    b3 = unif(ks[5], (1, ac_dim), hidden)
    log_std = jnp.zeros((ac_dim,), jnp.float32)

    ac_pad = _round_up(ac_dim, 128)
    w1s, w1g = w1[:state_dim], w1[state_dim:]
    w3p = jnp.zeros((hidden, ac_pad), jnp.float32).at[:, :ac_dim].set(w3)
    b3p = jnp.zeros((1, ac_pad), jnp.float32).at[:, :ac_dim].set(b3)

    return (w1s.astype(weight_dtype), w1g.astype(weight_dtype), b1,
            w2.astype(weight_dtype), b2,
            w3p.astype(weight_dtype), b3p,
            log_std)


def reference_forward(state, goal, params):
    """Pure-JAX reference of Policy.forward emulating the kernel's bf16 MXU feed."""
    w1s, w1g, b1, w2, b2, w3, b3, log_std = params
    ac_dim = log_std.shape[0]
    s = state.astype(jnp.bfloat16)
    g = goal.astype(jnp.bfloat16)
    h1 = jnp.maximum(
        jnp.dot(s, w1s, preferred_element_type=jnp.float32)
        + jnp.dot(g, w1g, preferred_element_type=jnp.float32) + b1, 0.0)
    h1 = h1.astype(jnp.bfloat16)
    h2 = jnp.maximum(
        jnp.dot(h1, w2, preferred_element_type=jnp.float32) + b2, 0.0)
    h2 = h2.astype(jnp.bfloat16)
    loc = jnp.tanh(jnp.dot(h2, w3, preferred_element_type=jnp.float32) + b3)
    return loc[:, :ac_dim], jnp.exp(log_std)


if __name__ == "__main__":
    key = jax.random.PRNGKey(0)
    k_s, k_g, k_p, k_s2, k_g2 = jax.random.split(key, 5)

    batch = 16
    state_dim = 12
    goal_dim = 4
    ac_dim = 4

    state = jax.random.normal(k_s, (batch, state_dim), jnp.float32)
    goal = jax.random.normal(k_g, (batch, goal_dim), jnp.float32)
    params = init_params(k_p, state_dim, goal_dim, ac_dim)

    # Small-batch (single-tile) path.
    loc, scale = policy_forward(state, goal, params)
    loc = jax.block_until_ready(loc)
    scale = jax.block_until_ready(scale)
    loc_ref, scale_ref = reference_forward(state, goal, params)

    assert loc.shape == (batch, ac_dim)
    assert scale.shape == (ac_dim,)
    assert jnp.allclose(loc, loc_ref, atol=5e-3, rtol=1e-2), "loc mismatch vs reference"
    assert jnp.allclose(scale, scale_ref, atol=1e-6), "scale mismatch vs reference"

    # Multi-tile path with a ragged last tile (exercises edge-block masking +
    # the two-tile "parallel" grid used for v7x megacore sharding).
    batch2 = 520
    state2 = jax.random.normal(k_s2, (batch2, state_dim), jnp.float32)
    goal2 = jax.random.normal(k_g2, (batch2, goal_dim), jnp.float32)
    loc2, _ = policy_forward(state2, goal2, params)
    loc2 = jax.block_until_ready(loc2)
    loc2_ref, _ = reference_forward(state2, goal2, params)
    assert loc2.shape == (batch2, ac_dim)
    assert jnp.allclose(loc2, loc2_ref, atol=5e-3, rtol=1e-2), "multi-tile loc mismatch"

    print("KERNEL_OK")
</pallas_src>

<mosaic_0001>
module attributes {stable_mosaic.version = 11 : i64} {
  func.func @policy_mlp_kernel(%arg0: i32, %arg1: memref<16x12xf32, #tpu.memory_space<vmem>>, %arg2: memref<16x4xf32, #tpu.memory_space<vmem>>, %arg3: memref<12x256xbf16, #tpu.memory_space<vmem>>, %arg4: memref<4x256xbf16, #tpu.memory_space<vmem>>, %arg5: memref<1x256xf32, #tpu.memory_space<vmem>>, %arg6: memref<256x256xbf16, #tpu.memory_space<vmem>>, %arg7: memref<1x256xf32, #tpu.memory_space<vmem>>, %arg8: memref<256x128xbf16, #tpu.memory_space<vmem>>, %arg9: memref<1x128xf32, #tpu.memory_space<vmem>>, %arg10: memref<16x128xf32, #tpu.memory_space<vmem>>) attributes {dimension_semantics = [#tpu.dimension_semantics<arbitrary>], iteration_bounds = array<i64: 1>, scalar_prefetch = 0 : i64, scratch_operands = 0 : i64, tpu.core_type = #tpu.core_type<tc>, window_params = [{transform_indices = @transform_0, window_bounds = array<i64: 16, 12>}, {transform_indices = @transform_1, window_bounds = array<i64: 16, 4>}, {pipeline_mode = #tpu.pipeline_mode<synchronous>, transform_indices = @transform_2, window_bounds = array<i64: 12, 256>}, {pipeline_mode = #tpu.pipeline_mode<synchronous>, transform_indices = @transform_3, window_bounds = array<i64: 4, 256>}, {pipeline_mode = #tpu.pipeline_mode<synchronous>, transform_indices = @transform_4, window_bounds = array<i64: 1, 256>}, {pipeline_mode = #tpu.pipeline_mode<synchronous>, transform_indices = @transform_5, window_bounds = array<i64: 256, 256>}, {pipeline_mode = #tpu.pipeline_mode<synchronous>, transform_indices = @transform_6, window_bounds = array<i64: 1, 256>}, {pipeline_mode = #tpu.pipeline_mode<synchronous>, transform_indices = @transform_7, window_bounds = array<i64: 256, 128>}, {pipeline_mode = #tpu.pipeline_mode<synchronous>, transform_indices = @transform_8, window_bounds = array<i64: 1, 128>}, {transform_indices = @transform_9, window_bounds = array<i64: 16, 128>}]} {
    %c0 = arith.constant 0 : index
    %c0_0 = arith.constant 0 : index
    %0 = vector.load %arg1[%c0, %c0_0] : memref<16x12xf32, #tpu.memory_space<vmem>>, vector<16x12xf32>
    %1 = arith.truncf %0 : vector<16x12xf32> to vector<16x12xbf16>
    %c0_1 = arith.constant 0 : index
    %c0_2 = arith.constant 0 : index
    %2 = vector.load %arg2[%c0_1, %c0_2] : memref<16x4xf32, #tpu.memory_space<vmem>>, vector<16x4xf32>
    %3 = arith.truncf %2 : vector<16x4xf32> to vector<16x4xbf16>
    %c0_3 = arith.constant 0 : index
    %c0_4 = arith.constant 0 : index
    %4 = vector.load %arg3[%c0_3, %c0_4] : memref<12x256xbf16, #tpu.memory_space<vmem>>, vector<12x256xbf16>
    %cst = arith.constant dense<0.000000e+00> : vector<16x256xf32>
    %5 = tpu.matmul %1, %4, %cst {dimension_numbers = #tpu.dot_dimension_numbers<[1], [0], [0], [1], [0, 0, 1, 1], [], []>} : vector<16x12xbf16>, vector<12x256xbf16>, vector<16x256xf32> -> vector<16x256xf32>
    %c0_5 = arith.constant 0 : index
    %c0_6 = arith.constant 0 : index
    %6 = vector.load %arg4[%c0_5, %c0_6] : memref<4x256xbf16, #tpu.memory_space<vmem>>, vector<4x256xbf16>
    %cst_7 = arith.constant dense<0.000000e+00> : vector<16x256xf32>
    %7 = tpu.matmul %3, %6, %cst_7 {dimension_numbers = #tpu.dot_dimension_numbers<[1], [0], [0], [1], [0, 0, 1, 1], [], []>} : vector<16x4xbf16>, vector<4x256xbf16>, vector<16x256xf32> -> vector<16x256xf32>
    %8 = arith.addf %5, %7 : vector<16x256xf32>
    %c0_8 = arith.constant 0 : index
    %c0_9 = arith.constant 0 : index
    %9 = vector.load %arg5[%c0_8, %c0_9] : memref<1x256xf32, #tpu.memory_space<vmem>>, vector<1x256xf32>
    %10 = vector.broadcast %9 : vector<1x256xf32> to vector<16x256xf32>
    %11 = arith.addf %8, %10 : vector<16x256xf32>
    %cst_10 = arith.constant 0.000000e+00 : f32
    %12 = vector.broadcast %cst_10 : f32 to vector<16x256xf32>
    %13 = arith.maximumf %11, %12 : vector<16x256xf32>
    %14 = arith.truncf %13 : vector<16x256xf32> to vector<16x256xbf16>
    %c0_11 = arith.constant 0 : index
    %c0_12 = arith.constant 0 : index
    %15 = vector.load %arg6[%c0_11, %c0_12] : memref<256x256xbf16, #tpu.memory_space<vmem>>, vector<256x256xbf16>
    %cst_13 = arith.constant dense<0.000000e+00> : vector<16x256xf32>
    %16 = tpu.matmul %14, %15, %cst_13 {dimension_numbers = #tpu.dot_dimension_numbers<[1], [0], [0], [1], [0, 0, 1, 1], [], []>} : vector<16x256xbf16>, vector<256x256xbf16>, vector<16x256xf32> -> vector<16x256xf32>
    %c0_14 = arith.constant 0 : index
    %c0_15 = arith.constant 0 : index
    %17 = vector.load %arg7[%c0_14, %c0_15] : memref<1x256xf32, #tpu.memory_space<vmem>>, vector<1x256xf32>
    %18 = vector.broadcast %17 : vector<1x256xf32> to vector<16x256xf32>
    %19 = arith.addf %16, %18 : vector<16x256xf32>
    %cst_16 = arith.constant 0.000000e+00 : f32
    %20 = vector.broadcast %cst_16 : f32 to vector<16x256xf32>
    %21 = arith.maximumf %19, %20 : vector<16x256xf32>
    %22 = arith.truncf %21 : vector<16x256xf32> to vector<16x256xbf16>
    %c0_17 = arith.constant 0 : index
    %c0_18 = arith.constant 0 : index
    %23 = vector.load %arg8[%c0_17, %c0_18] : memref<256x128xbf16, #tpu.memory_space<vmem>>, vector<256x128xbf16>
    %cst_19 = arith.constant dense<0.000000e+00> : vector<16x128xf32>
    %24 = tpu.matmul %22, %23, %cst_19 {dimension_numbers = #tpu.dot_dimension_numbers<[1], [0], [0], [1], [0, 0, 1, 1], [], []>} : vector<16x256xbf16>, vector<256x128xbf16>, vector<16x128xf32> -> vector<16x128xf32>
    %c0_20 = arith.constant 0 : index
    %c0_21 = arith.constant 0 : index
    %25 = vector.load %arg9[%c0_20, %c0_21] : memref<1x128xf32, #tpu.memory_space<vmem>>, vector<1x128xf32>
    %26 = vector.broadcast %25 : vector<1x128xf32> to vector<16x128xf32>
    %27 = arith.addf %24, %26 : vector<16x128xf32>
    %28 = math.tanh %27 : vector<16x128xf32>
    %c0_22 = arith.constant 0 : index
    %c0_23 = arith.constant 0 : index
    %29 = vector.load %arg10[%c0_22, %c0_23] : memref<16x128xf32, #tpu.memory_space<vmem>>, vector<16x128xf32>
    tpu.vector_store %arg10[%c0_22, %c0_23], %28 {strides = array<i32>} : memref<16x128xf32, #tpu.memory_space<vmem>>, vector<16x128xf32>,
    return
  }
  func.func @transform_0(%arg0: i32) -> (i32, i32) {
    %c0_i32 = arith.constant 0 : i32
    %c0_i32_0 = arith.constant 0 : i32
    return %arg0, %c0_i32 : i32, i32
  }
  func.func @transform_1(%arg0: i32) -> (i32, i32) {
    %c0_i32 = arith.constant 0 : i32
    %c0_i32_0 = arith.constant 0 : i32
    return %arg0, %c0_i32 : i32, i32
  }
  func.func @transform_2(%arg0: i32) -> (i32, i32) {
    %c0_i32 = arith.constant 0 : i32
    %c0_i32_0 = arith.constant 0 : i32
    %c0_i32_1 = arith.constant 0 : i32
    return %c0_i32, %c0_i32_0 : i32, i32
  }
  func.func @transform_3(%arg0: i32) -> (i32, i32) {
    %c0_i32 = arith.constant 0 : i32
    %c0_i32_0 = arith.constant 0 : i32
    %c0_i32_1 = arith.constant 0 : i32
    return %c0_i32, %c0_i32_0 : i32, i32
  }
  func.func @transform_4(%arg0: i32) -> (i32, i32) {
    %c0_i32 = arith.constant 0 : i32
    %c0_i32_0 = arith.constant 0 : i32
    %c0_i32_1 = arith.constant 0 : i32
    return %c0_i32, %c0_i32_0 : i32, i32
  }
  func.func @transform_5(%arg0: i32) -> (i32, i32) {
    %c0_i32 = arith.constant 0 : i32
    %c0_i32_0 = arith.constant 0 : i32
    %c0_i32_1 = arith.constant 0 : i32
    return %c0_i32, %c0_i32_0 : i32, i32
  }
  func.func @transform_6(%arg0: i32) -> (i32, i32) {
    %c0_i32 = arith.constant 0 : i32
    %c0_i32_0 = arith.constant 0 : i32
    %c0_i32_1 = arith.constant 0 : i32
    return %c0_i32, %c0_i32_0 : i32, i32
  }
  func.func @transform_7(%arg0: i32) -> (i32, i32) {
    %c0_i32 = arith.constant 0 : i32
    %c0_i32_0 = arith.constant 0 : i32
    %c0_i32_1 = arith.constant 0 : i32
    return %c0_i32, %c0_i32_0 : i32, i32
  }
  func.func @transform_8(%arg0: i32) -> (i32, i32) {
    %c0_i32 = arith.constant 0 : i32
    %c0_i32_0 = arith.constant 0 : i32
    %c0_i32_1 = arith.constant 0 : i32
    return %c0_i32, %c0_i32_0 : i32, i32
  }
  func.func @transform_9(%arg0: i32) -> (i32, i32) {
    %c0_i32 = arith.constant 0 : i32
    %c0_i32_0 = arith.constant 0 : i32
    return %arg0, %c0_i32 : i32, i32
  }
}

</mosaic_0001>

<llo_original>
// kernel: tpu_custom_call.1
$region0: #{tpu_custom_call.1}
  #allocation0 [shape = 'u32[]', space=smem, size = 0x4, offset = 0x4, fixed_abs, tag = 'smem constant byte address 0x4 - core index']
  #allocation1 [shape = 'u32[144,128]{1,0:T(1,128)}', space=vmem, size = 0x12000, scoped, tag = 'internal scratch']
  %s0 = inlined_call_operand.vmem [shape: f32[16,12], index: 0, kind: input, shape index: {}]
  %s1 = inlined_call_operand.vmem [shape: f32[16,4], index: 1, kind: input, shape index: {}]
  %s2 = inlined_call_operand.hbm [shape: bf16[12,256], index: 2, kind: input, shape index: {}]
  %s3 = inlined_call_operand.vmem [shape: bf16[4,256], index: 3, kind: input, shape index: {}]
  %s4 = inlined_call_operand.vmem [shape: f32[1,256], index: 4, kind: input, shape index: {}]
  %s5 = inlined_call_operand.hbm [shape: bf16[256,256], index: 5, kind: input, shape index: {}]
  %s6 = inlined_call_operand.vmem [shape: f32[1,256], index: 6, kind: input, shape index: {}]
  %s7 = inlined_call_operand.hbm [shape: bf16[256,128], index: 7, kind: input, shape index: {}]
  %s8 = inlined_call_operand.vmem [shape: f32[1,128], index: 8, kind: input, shape index: {}]
  %s9 = inlined_call_operand.hbm [shape: f32[16,128], index: 9, kind: output, shape index: {}]
  %s10 = sld [smem:[#allocation0]]
  $region58: #{tpu_custom_call.1} parent=0
    _
  %s12 = ssub.s32 1, %s10
  %s13 = scalar_select 0, %s12, %s10
  $region1: #{tpu_custom_call.1} parent=0
    #allocation2 [shape = 'u8[8192]{0}', space=vmem, size = 0x2000, scoped, tag = 'input window, operand 2, single buffered']
    #allocation3 [shape = 's32[1]{0}', space=sflag, size = 0x4, scoped, tag = 'scoped memory for tpu_custom_call.1']
    #allocation4 [shape = 's32[1]{0}', space=sflag, size = 0x4, scoped, tag = 'scoped memory for tpu_custom_call.1']
    #allocation5 [shape = 'u8[131072]{0}', space=vmem, size = 0x20000, scoped, tag = 'input window, operand 5, single buffered']
    #allocation6 [shape = 's32[1]{0}', space=sflag, size = 0x4, scoped, tag = 'scoped memory for tpu_custom_call.1']
    #allocation7 [shape = 'u8[65536]{0}', space=vmem, size = 0x10000, scoped, tag = 'input window, operand 7, single buffered']
    #allocation8 [shape = 'u8[8192]{0}', space=vmem, size = 0x2000, scoped, tag = 'output window, operand 0, single buffered']
    %14 = vsyncpa [#allocation3], 0
    %15 = vsyncpa [#allocation6], 0
    %16 = vsyncpa [#allocation4], 0
    // Predicated region
    $region2: #{tpu_custom_call.1} parent=1 // pred_check
      _
    $region3: #{tpu_custom_call.1} parent=1 // pred_check_branch
      %18 = sbr.rel (0) target = $region5
    $region4: #{tpu_custom_call.1} parent=1 // pred_region
      _
    $region5: #{tpu_custom_call.1} parent=1 // pred_fallthru
      _
    // Predicated region
    $region6: #{tpu_custom_call.1} parent=1 // pred_check
      _
    $region7: #{tpu_custom_call.1} parent=1 // pred_check_branch
      %20 = sbr.rel (0) target = $region9
    $region8: #{tpu_custom_call.1} parent=1 // pred_region
      _
    $region9: #{tpu_custom_call.1} parent=1 // pred_fallthru
      _
    // Predicated region
    $region10: #{tpu_custom_call.1} parent=1 // pred_check
      _
    $region11: #{tpu_custom_call.1} parent=1 // pred_check_branch
      %22 = sbr.rel (0) target = $region13
    $region12: #{tpu_custom_call.1} parent=1 // pred_region
      %s24 = ssub.s32 256, 256
      %25 = vsyncadd [#allocation3], %s24
      %s26 = sshll.u32 [#allocation2], 4
      %s27 = int_to_ptr.vmem [resolvable:$true] %s26
      %32 = dma.hbm_to_vmem [thread:$0]  %s2, 256, %s27, [#allocation3], 128, 128, 8
    $region13: #{tpu_custom_call.1} parent=1 // pred_fallthru
      _
    // Predicated region
    $region14: #{tpu_custom_call.1} parent=1 // pred_check
      _
    $region15: #{tpu_custom_call.1} parent=1 // pred_check_branch
      %34 = sbr.rel (0) target = $region17
    $region16: #{tpu_custom_call.1} parent=1 // pred_region
      _
    $region17: #{tpu_custom_call.1} parent=1 // pred_fallthru
      _
    // Predicated region
    $region18: #{tpu_custom_call.1} parent=1 // pred_check
      _
    $region19: #{tpu_custom_call.1} parent=1 // pred_check_branch
      %36 = sbr.rel (0) target = $region21
    $region20: #{tpu_custom_call.1} parent=1 // pred_region
      _
    $region21: #{tpu_custom_call.1} parent=1 // pred_fallthru
      _
    // Predicated region
    $region22: #{tpu_custom_call.1} parent=1 // pred_check
      _
    $region23: #{tpu_custom_call.1} parent=1 // pred_check_branch
      %38 = sbr.rel (0) target = $region25
    $region24: #{tpu_custom_call.1} parent=1 // pred_region
      %s40 = ssub.s32 4096, 4096
      %41 = vsyncadd [#allocation6], %s40
      %s42 = sshll.u32 [#allocation5], 4
      %s43 = int_to_ptr.vmem [resolvable:$true] %s42
      %48 = dma.hbm_to_vmem [thread:$0]  %s5, 4096, %s43, [#allocation6], 128, 128, 8
    $region25: #{tpu_custom_call.1} parent=1 // pred_fallthru
      _
    // Predicated region
    $region26: #{tpu_custom_call.1} parent=1 // pred_check
      _
    $region27: #{tpu_custom_call.1} parent=1 // pred_check_branch
      %50 = sbr.rel (0) target = $region29
    $region28: #{tpu_custom_call.1} parent=1 // pred_region
      _
    $region29: #{tpu_custom_call.1} parent=1 // pred_fallthru
      _
    // Predicated region
    $region30: #{tpu_custom_call.1} parent=1 // pred_check
      _
    $region31: #{tpu_custom_call.1} parent=1 // pred_check_branch
      %52 = sbr.rel (0) target = $region33
    $region32: #{tpu_custom_call.1} parent=1 // pred_region
      %s54 = ssub.s32 2048, 2048
      %55 = vsyncadd [#allocation6], %s54
      %s56 = sshll.u32 [#allocation7], 4
      %s57 = int_to_ptr.vmem [resolvable:$true] %s56
      %62 = dma.hbm_to_vmem [thread:$0]  %s7, 2048, %s57, [#allocation6], 64, 64, 4
    $region33: #{tpu_custom_call.1} parent=1 // pred_fallthru
      _
    // Predicated region
    $region34: #{tpu_custom_call.1} parent=1 // pred_check
      _
    $region35: #{tpu_custom_call.1} parent=1 // pred_check_branch
      %64 = sbr.rel (0) target = $region37
    $region36: #{tpu_custom_call.1} parent=1 // pred_region
      _
    $region37: #{tpu_custom_call.1} parent=1 // pred_fallthru
      _
    // Predicated region
    $region38: #{tpu_custom_call.1} parent=1 // pred_check
      _
    $region39: #{tpu_custom_call.1} parent=1 // pred_check_branch
      %66 = sbr.rel (0) target = $region41
    $region40: #{tpu_custom_call.1} parent=1 // pred_region
      %67 = dma.done [#allocation3], 256
    $region41: #{tpu_custom_call.1} parent=1 // pred_fallthru
      _
    // Predicated region
    $region42: #{tpu_custom_call.1} parent=1 // pred_check
      _
    $region43: #{tpu_custom_call.1} parent=1 // pred_check_branch
      %69 = sbr.rel (0) target = $region45
    $region44: #{tpu_custom_call.1} parent=1 // pred_region
      %70 = dma.done [#allocation6], 4096
    $region45: #{tpu_custom_call.1} parent=1 // pred_fallthru
      _
    // Predicated region
    $region46: #{tpu_custom_call.1} parent=1 // pred_check
      _
    $region47: #{tpu_custom_call.1} parent=1 // pred_check_branch
      %72 = sbr.rel (0) target = $region49
    $region48: #{tpu_custom_call.1} parent=1 // pred_region
      %73 = dma.done [#allocation6], 2048
    $region49: #{tpu_custom_call.1} parent=1 // pred_fallthru
      _
    %v75 = vld [vmem:[%s0] sm:$0xff]
    %v76 = vld [vmem:[%s0 + $0x8] sm:$0xff]
    %v77 = vpack.c.bf16 %v76, %v75
    %v78 = vld [vmem:[%s1] sm:$0xff]
    %v79 = vld [vmem:[%s1 + $0x8] sm:$0xff]
    %v80 = vpack.c.bf16 %v79, %v78
    %v81 = vld [vmem:[#allocation2] sm:$0xff]
    %v82 = vld [vmem:[#allocation2 + $0x8] sm:$0x33]
    %v83 = vld [vmem:[%s3] sm:$0xf]
    %v86 = vunpack.c.l.s4 1983009808
    %v87 = vunpack.c.0.s8 %v86
    %v88 = vlaneseq
    %v89 = vshrl.u32 %v88, 7
    %v90 = vsub.s32 %v87, %v89
    %v91 = vrot.slane %v83, %v90
    %v92 = vcombine.high %v91, %v91
    %vm93 = vcmask 31744
    %v95 = vsel %vm93, %v80, 0
    %vm97 = vcmask 1041408
    %v99 = vsel %vm97, %v91, 0
    %v102 = vsel %vm97, %v92, 0
    %104 = vmatprep.subr.bf16.mxu0 0
    %105 = vmatpush1.bf16.msra.mxu0 0
    %106 = vmatprep.subr.bf16.mxu0 0
    %107 = vmatpush1.bf16.msra.mxu0 0
    %108 = vmatprep.subr.bf16.mxu0 0
    %109 = vmatpush1.bf16.msra.mxu0 0
    %110 = vmatprep.subr.bf16.mxu0 0
    %111 = vmatpush1.bf16.msra.mxu0 0
    %112 = vmatprep.subr.bf16.mxu0 0
    %113 = vmatpush1.bf16.msra.mxu0 0
    %114 = vmatprep.subr.bf16.mxu0 0
    %115 = vmatpush1.bf16.msra.mxu0 0
    %116 = vmatprep.subr.bf16.mxu0 0
    %117 = vmatpush1.bf16.msra.mxu0 0
    %118 = vmatprep.subr.bf16.mxu0 %v102
    %119 = vmatpush1.bf16.msra.mxu0 %v99
    %120 = vmatprep.subr.bf16.mxu0 0
    %121 = vmatpush2.bf16.msra.mxu0 0
    %122 = vmatprep.subr.bf16.mxu0 0
    %123 = vmatpush2.bf16.msra.mxu0 0
    %124 = vmatprep.subr.bf16.mxu0 0
    %125 = vmatpush2.bf16.msra.mxu0 0
    %126 = vmatprep.subr.bf16.mxu0 0
    %127 = vmatpush2.bf16.msra.mxu0 0
    %128 = vmatprep.subr.bf16.mxu0 0
    %129 = vmatpush2.bf16.msra.mxu0 0
    %130 = vmatprep.subr.bf16.mxu0 0
    %131 = vmatpush2.bf16.msra.mxu0 0
    %132 = vmatprep.subr.bf16.mxu0 0
    %133 = vmatpush2.bf16.msra.mxu0 0
    %134 = vmatprep.subr.bf16.mxu0 0
    %135 = vmatpush2.bf16.msra.mxu0 0
    %136 = vmatprep.mubr.bf16.mxu0 0
    %137 = vmatmul.mubr.bf16.gmra.mxu0 %v95
    %v138 = vpop.f32.mrf.mxu0
    %v139 = vadd.f32 0.0, %v138
    %v140 = vpop.f32.mrf.mxu0
    %v141 = vadd.f32 0.0, %v140
    %v142 = vpop.f32.mrf.mxu0
    %v143 = vadd.f32 0.0, %v142
    %v144 = vpop.f32.mrf.mxu0
    %v145 = vadd.f32 0.0, %v144
    %146 = vdwg.mxu0
    %v149 = vunpack.c.l.b16 %v81
    %v150 = vunpack.c.h.b16 %v81
    %v151 = vunpack.c.l.b16 %v82
    %v152 = vunpack.c.h.b16 %v82
    %v153 = vpack.c.b16 %v151, %v149
    %v154 = vpack.c.b16 %v152, %v150
    %vm155 = vcmask 97280
    %v157 = vsel %vm155, %v77, 0
    %vm159 = vcmask 1045504
    %v161 = vsel %vm159, %v153, 0
    %v164 = vsel %vm159, %v154, 0
    %166 = vmatprep.subr.bf16.mxu0 0
    %167 = vmatpush1.bf16.msra.mxu0 0
    %168 = vmatprep.subr.bf16.mxu0 0
    %169 = vmatpush1.bf16.msra.mxu0 0
    %170 = vmatprep.subr.bf16.mxu0 0
    %171 = vmatpush1.bf16.msra.mxu0 0
    %172 = vmatprep.subr.bf16.mxu0 0
    %173 = vmatpush1.bf16.msra.mxu0 0
    %174 = vmatprep.subr.bf16.mxu0 0
    %175 = vmatpush1.bf16.msra.mxu0 0
    %176 = vmatprep.subr.bf16.mxu0 0
    %177 = vmatpush1.bf16.msra.mxu0 0
    %178 = vmatprep.subr.bf16.mxu0 0
    %179 = vmatpush1.bf16.msra.mxu0 0
    %180 = vmatprep.subr.bf16.mxu0 %v164
    %181 = vmatpush1.bf16.msra.mxu0 %v161
    %182 = vmatprep.subr.bf16.mxu0 0
    %183 = vmatpush2.bf16.msra.mxu0 0
    %184 = vmatprep.subr.bf16.mxu0 0
    %185 = vmatpush2.bf16.msra.mxu0 0
    %186 = vmatprep.subr.bf16.mxu0 0
    %187 = vmatpush2.bf16.msra.mxu0 0
    %188 = vmatprep.subr.bf16.mxu0 0
    %189 = vmatpush2.bf16.msra.mxu0 0
    %190 = vmatprep.subr.bf16.mxu0 0
    %191 = vmatpush2.bf16.msra.mxu0 0
    %192 = vmatprep.subr.bf16.mxu0 0
    %193 = vmatpush2.bf16.msra.mxu0 0
    %194 = vmatprep.subr.bf16.mxu0 0
    %195 = vmatpush2.bf16.msra.mxu0 0
    %196 = vmatprep.subr.bf16.mxu0 0
    %197 = vmatpush2.bf16.msra.mxu0 0
    %198 = vmatprep.mubr.bf16.mxu0 0
    %199 = vmatmul.mubr.bf16.gmra.mxu0 %v157
    %v200 = vpop.f32.mrf.mxu0
    %v201 = vadd.f32 %v139, %v200
    %v202 = vpop.f32.mrf.mxu0
    %v203 = vadd.f32 %v141, %v202
    %v204 = vpop.f32.mrf.mxu0
    %v205 = vadd.f32 %v143, %v204
    %v206 = vpop.f32.mrf.mxu0
    %v207 = vadd.f32 %v145, %v206
    %208 = vdwg.mxu0
    %v209 = vld [vmem:[%s4] sm:$0x3]
    %v211 = vlaneseq
    %v212 = vshrl.u32 %v211, 7
    %v213 = vsub.s32 0, %v212
    %v214 = vrot.slane %v209, %v213
    %v215 = vlaneseq
    %v216 = vshrl.u32 %v215, 7
    %v217 = vsub.s32 1, %v216
    %v218 = vrot.slane %v209, %v217
    %v221 = vadd.f32 %v201, %v214
    %v222 = vadd.f32 %v203, %v218
    %v223 = vadd.f32 %v205, %v214
    %v224 = vadd.f32 %v207, %v218
    %v225 = vmax.f32 %v221, 0.0
    %v226 = vmax.f32 %v222, 0.0
    %v227 = vmax.f32 %v223, 0.0
    %v228 = vmax.f32 %v224, 0.0
    %v229 = vpack.c.bf16 %v227, %v225
    %v230 = vpack.c.bf16 %v228, %v226
    %v231 = vld [vmem:[#allocation5] sm:$0xff]
    %v232 = vld [vmem:[#allocation5 + $0x8] sm:$0xff]
    %v233 = vld [vmem:[#allocation5 + $0x10] sm:$0xff]
    %v234 = vld [vmem:[#allocation5 + $0x18] sm:$0xff]
    %v235 = vld [vmem:[#allocation5 + $0x20] sm:$0xff]
    %v236 = vld [vmem:[#allocation5 + $0x28] sm:$0xff]
    %v237 = vld [vmem:[#allocation5 + $0x30] sm:$0xff]
    %v238 = vld [vmem:[#allocation5 + $0x38] sm:$0xff]
    %v239 = vld [vmem:[#allocation5 + $0x40] sm:$0xff]
    %v240 = vld [vmem:[#allocation5 + $0x48] sm:$0xff]
    %v241 = vld [vmem:[#allocation5 + $0x50] sm:$0xff]
    %v242 = vld [vmem:[#allocation5 + $0x58] sm:$0xff]
    %v243 = vld [vmem:[#allocation5 + $0x60] sm:$0xff]
    %v244 = vld [vmem:[#allocation5 + $0x68] sm:$0xff]
    %v245 = vld [vmem:[#allocation5 + $0x70] sm:$0xff]
    %v246 = vld [vmem:[#allocation5 + $0x78] sm:$0xff]
    %v247 = vld [vmem:[#allocation5 + $0x80] sm:$0xff]
    %v248 = vld [vmem:[#allocation5 + $0x88] sm:$0xff]
    %v249 = vld [vmem:[#allocation5 + $0x90] sm:$0xff]
    %v250 = vld [vmem:[#allocation5 + $0x98] sm:$0xff]
    %v251 = vld [vmem:[#allocation5 + $0xa0] sm:$0xff]
    %v252 = vld [vmem:[#allocation5 + $0xa8] sm:$0xff]
    %v253 = vld [vmem:[#allocation5 + $0xb0] sm:$0xff]
    %v254 = vld [vmem:[#allocation5 + $0xb8] sm:$0xff]
    %v255 = vld [vmem:[#allocation5 + $0xc0] sm:$0xff]
    %v256 = vld [vmem:[#allocation5 + $0xc8] sm:$0xff]
    %v257 = vld [vmem:[#allocation5 + $0xd0] sm:$0xff]
    %v258 = vld [vmem:[#allocation5 + $0xd8] sm:$0xff]
    %v259 = vld [vmem:[#allocation5 + $0xe0] sm:$0xff]
    %v260 = vld [vmem:[#allocation5 + $0xe8] sm:$0xff]
    %v261 = vld [vmem:[#allocation5 + $0xf0] sm:$0xff]
    %v262 = vld [vmem:[#allocation5 + $0xf8] sm:$0xff]
    %v263 = vld [vmem:[%s6] sm:$0x3]
    %v265 = vlaneseq
    %v266 = vshrl.u32 %v265, 7
    %v267 = vsub.s32 0, %v266
    %v268 = vrot.slane %v263, %v267
    %v269 = vlaneseq
    %v270 = vshrl.u32 %v269, 7
    %v271 = vsub.s32 1, %v270
    %v272 = vrot.slane %v263, %v271
    %v307 = vunpack.c.l.b16 %v231
    %v308 = vunpack.c.h.b16 %v231
    %v309 = vunpack.c.l.b16 %v232
    %v310 = vunpack.c.h.b16 %v232
    %v311 = vunpack.c.l.b16 %v233
    %v312 = vunpack.c.h.b16 %v233
    %v313 = vunpack.c.l.b16 %v234
    %v314 = vunpack.c.h.b16 %v234
    %v315 = vunpack.c.l.b16 %v235
    %v316 = vunpack.c.h.b16 %v235
    %v317 = vunpack.c.l.b16 %v236
    %v318 = vunpack.c.h.b16 %v236
    %v319 = vunpack.c.l.b16 %v237
    %v320 = vunpack.c.h.b16 %v237
    %v321 = vunpack.c.l.b16 %v238
    %v322 = vunpack.c.h.b16 %v238
    %v323 = vunpack.c.l.b16 %v239
    %v324 = vunpack.c.h.b16 %v239
    %v325 = vunpack.c.l.b16 %v240
    %v326 = vunpack.c.h.b16 %v240
    %v327 = vunpack.c.l.b16 %v241
    %v328 = vunpack.c.h.b16 %v241
    %v329 = vunpack.c.l.b16 %v242
    %v330 = vunpack.c.h.b16 %v242
    %v331 = vunpack.c.l.b16 %v243
    %v332 = vunpack.c.h.b16 %v243
    %v333 = vunpack.c.l.b16 %v244
    %v334 = vunpack.c.h.b16 %v244
    %v335 = vunpack.c.l.b16 %v245
    %v336 = vunpack.c.h.b16 %v245
    %v337 = vunpack.c.l.b16 %v246
    %v338 = vunpack.c.h.b16 %v246
    %v339 = vunpack.c.l.b16 %v247
    %v340 = vunpack.c.h.b16 %v247
    %v341 = vunpack.c.l.b16 %v248
    %v342 = vunpack.c.h.b16 %v248
    %v343 = vunpack.c.l.b16 %v249
    %v344 = vunpack.c.h.b16 %v249
    %v345 = vunpack.c.l.b16 %v250
    %v346 = vunpack.c.h.b16 %v250
    %v347 = vunpack.c.l.b16 %v251
    %v348 = vunpack.c.h.b16 %v251
    %v349 = vunpack.c.l.b16 %v252
    %v350 = vunpack.c.h.b16 %v252
    %v351 = vunpack.c.l.b16 %v253
    %v352 = vunpack.c.h.b16 %v253
    %v353 = vunpack.c.l.b16 %v254
    %v354 = vunpack.c.h.b16 %v254
    %v355 = vunpack.c.l.b16 %v255
    %v356 = vunpack.c.h.b16 %v255
    %v357 = vunpack.c.l.b16 %v256
    %v358 = vunpack.c.h.b16 %v256
    %v359 = vunpack.c.l.b16 %v257
    %v360 = vunpack.c.h.b16 %v257
    %v361 = vunpack.c.l.b16 %v258
    %v362 = vunpack.c.h.b16 %v258
    %v363 = vunpack.c.l.b16 %v259
    %v364 = vunpack.c.h.b16 %v259
    %v365 = vunpack.c.l.b16 %v260
    %v366 = vunpack.c.h.b16 %v260
    %v367 = vunpack.c.l.b16 %v261
    %v368 = vunpack.c.h.b16 %v261
    %v369 = vunpack.c.l.b16 %v262
    %v370 = vunpack.c.h.b16 %v262
    %v371 = vpack.c.b16 %v309, %v307
    %v372 = vpack.c.b16 %v310, %v308
    %v373 = vpack.c.b16 %v313, %v311
    %v374 = vpack.c.b16 %v314, %v312
    %v375 = vpack.c.b16 %v317, %v315
    %v376 = vpack.c.b16 %v318, %v316
    %v377 = vpack.c.b16 %v321, %v319
    %v378 = vpack.c.b16 %v322, %v320
    %v379 = vpack.c.b16 %v325, %v323
    %v380 = vpack.c.b16 %v326, %v324
    %v381 = vpack.c.b16 %v329, %v327
    %v382 = vpack.c.b16 %v330, %v328
    %v383 = vpack.c.b16 %v333, %v331
    %v384 = vpack.c.b16 %v334, %v332
    %v385 = vpack.c.b16 %v337, %v335
    %v386 = vpack.c.b16 %v338, %v336
    %v387 = vpack.c.b16 %v341, %v339
    %v388 = vpack.c.b16 %v342, %v340
    %v389 = vpack.c.b16 %v345, %v343
    %v390 = vpack.c.b16 %v346, %v344
    %v391 = vpack.c.b16 %v349, %v347
    %v392 = vpack.c.b16 %v350, %v348
    %v393 = vpack.c.b16 %v353, %v351
    %v394 = vpack.c.b16 %v354, %v352
    %v395 = vpack.c.b16 %v357, %v355
    %v396 = vpack.c.b16 %v358, %v356
    %v397 = vpack.c.b16 %v361, %v359
    %v398 = vpack.c.b16 %v362, %v360
    %v399 = vpack.c.b16 %v365, %v363
    %v400 = vpack.c.b16 %v366, %v364
    %v401 = vpack.c.b16 %v369, %v367
    %v402 = vpack.c.b16 %v370, %v368
    %435 = vmatprep.subr.bf16.mxu0 %v386
    %436 = vmatpush1.bf16.msra.mxu0 %v385
    %437 = vmatprep.subr.bf16.mxu0 %v384
    %438 = vmatpush1.bf16.msra.mxu0 %v383
    %439 = vmatprep.subr.bf16.mxu0 %v382
    %440 = vmatpush1.bf16.msra.mxu0 %v381
    %441 = vmatprep.subr.bf16.mxu0 %v380
    %442 = vmatpush1.bf16.msra.mxu0 %v379
    %443 = vmatprep.subr.bf16.mxu0 %v378
    %444 = vmatpush1.bf16.msra.mxu0 %v377
    %445 = vmatprep.subr.bf16.mxu0 %v376
    %446 = vmatpush1.bf16.msra.mxu0 %v375
    %447 = vmatprep.subr.bf16.mxu0 %v374
    %448 = vmatpush1.bf16.msra.mxu0 %v373
    %449 = vmatprep.subr.bf16.mxu0 %v372
    %450 = vmatpush1.bf16.msra.mxu0 %v371
    %451 = vmatprep.subr.bf16.mxu0 %v402
    %452 = vmatpush2.bf16.msra.mxu0 %v401
    %453 = vmatprep.subr.bf16.mxu0 %v400
    %454 = vmatpush2.bf16.msra.mxu0 %v399
    %455 = vmatprep.subr.bf16.mxu0 %v398
    %456 = vmatpush2.bf16.msra.mxu0 %v397
    %457 = vmatprep.subr.bf16.mxu0 %v396
    %458 = vmatpush2.bf16.msra.mxu0 %v395
    %459 = vmatprep.subr.bf16.mxu0 %v394
    %460 = vmatpush2.bf16.msra.mxu0 %v393
    %461 = vmatprep.subr.bf16.mxu0 %v392
    %462 = vmatpush2.bf16.msra.mxu0 %v391
    %463 = vmatprep.subr.bf16.mxu0 %v390
    %464 = vmatpush2.bf16.msra.mxu0 %v389
    %465 = vmatprep.subr.bf16.mxu0 %v388
    %466 = vmatpush2.bf16.msra.mxu0 %v387
    %467 = vmatprep.mubr.bf16.mxu0 %v230
    %468 = vmatmul.mubr.bf16.gmra.mxu0 %v229
    %v469 = vpop.f32.mrf.mxu0
    %v470 = vadd.f32 %v268, %v469
    %v471 = vpop.f32.mrf.mxu0
    %v472 = vadd.f32 %v272, %v471
    %v473 = vpop.f32.mrf.mxu0
    %v474 = vadd.f32 %v268, %v473
    %v475 = vpop.f32.mrf.mxu0
    %v476 = vadd.f32 %v272, %v475
    %477 = vdwg.mxu0
    %v478 = vmax.f32 %v470, 0.0
    %v479 = vmax.f32 %v472, 0.0
    %v480 = vmax.f32 %v474, 0.0
    %v481 = vmax.f32 %v476, 0.0
    %v482 = vpack.c.bf16 %v480, %v478
    %v483 = vpack.c.bf16 %v481, %v479
    %v484 = vld [vmem:[#allocation7] sm:$0xf]
    %v485 = vld [vmem:[#allocation7 + $0x4] sm:$0xf]
    %v486 = vld [vmem:[#allocation7 + $0x8] sm:$0xf]
    %v487 = vld [vmem:[#allocation7 + $0xc] sm:$0xf]
    %v488 = vld [vmem:[#allocation7 + $0x10] sm:$0xf]
    %v489 = vld [vmem:[#allocation7 + $0x14] sm:$0xf]
    %v490 = vld [vmem:[#allocation7 + $0x18] sm:$0xf]
    %v491 = vld [vmem:[#allocation7 + $0x1c] sm:$0xf]
    %v492 = vld [vmem:[#allocation7 + $0x20] sm:$0xf]
    %v493 = vld [vmem:[#allocation7 + $0x24] sm:$0xf]
    %v494 = vld [vmem:[#allocation7 + $0x28] sm:$0xf]
    %v495 = vld [vmem:[#allocation7 + $0x2c] sm:$0xf]
    %v496 = vld [vmem:[#allocation7 + $0x30] sm:$0xf]
    %v497 = vld [vmem:[#allocation7 + $0x34] sm:$0xf]
    %v498 = vld [vmem:[#allocation7 + $0x38] sm:$0xf]
    %v499 = vld [vmem:[#allocation7 + $0x3c] sm:$0xf]
    %v500 = vld [vmem:[#allocation7 + $0x40] sm:$0xf]
    %v501 = vld [vmem:[#allocation7 + $0x44] sm:$0xf]
    %v502 = vld [vmem:[#allocation7 + $0x48] sm:$0xf]
    %v503 = vld [vmem:[#allocation7 + $0x4c] sm:$0xf]
    %v504 = vld [vmem:[#allocation7 + $0x50] sm:$0xf]
    %v505 = vld [vmem:[#allocation7 + $0x54] sm:$0xf]
    %v506 = vld [vmem:[#allocation7 + $0x58] sm:$0xf]
    %v507 = vld [vmem:[#allocation7 + $0x5c] sm:$0xf]
    %v508 = vld [vmem:[#allocation7 + $0x60] sm:$0xf]
    %v509 = vld [vmem:[#allocation7 + $0x64] sm:$0xf]
    %v510 = vld [vmem:[#allocation7 + $0x68] sm:$0xf]
    %v511 = vld [vmem:[#allocation7 + $0x6c] sm:$0xf]
    %v512 = vld [vmem:[#allocation7 + $0x70] sm:$0xf]
    %v513 = vld [vmem:[#allocation7 + $0x74] sm:$0xf]
    %v514 = vld [vmem:[#allocation7 + $0x78] sm:$0xf]
    %v515 = vld [vmem:[#allocation7 + $0x7c] sm:$0xf]
    %v516 = vld [vmem:[%s8] sm:$0x1]
    %v518 = vlaneseq
    %v519 = vshrl.u32 %v518, 7
    %v520 = vsub.s32 0, %v519
    %v521 = vrot.slane %v516, %v520
    %v555 = vunpack.c.l.b16 %v484
    %v556 = vunpack.c.l.b16 %v485
    %v557 = vunpack.c.l.b16 %v486
    %v558 = vunpack.c.l.b16 %v487
    %v559 = vunpack.c.l.b16 %v488
    %v560 = vunpack.c.l.b16 %v489
    %v561 = vunpack.c.l.b16 %v490
    %v562 = vunpack.c.l.b16 %v491
    %v563 = vunpack.c.l.b16 %v492
    %v564 = vunpack.c.l.b16 %v493
    %v565 = vunpack.c.l.b16 %v494
    %v566 = vunpack.c.l.b16 %v495
    %v567 = vunpack.c.l.b16 %v496
    %v568 = vunpack.c.l.b16 %v497
    %v569 = vunpack.c.l.b16 %v498
    %v570 = vunpack.c.l.b16 %v499
    %v571 = vunpack.c.l.b16 %v500
    %v572 = vunpack.c.l.b16 %v501
    %v573 = vunpack.c.l.b16 %v502
    %v574 = vunpack.c.l.b16 %v503
    %v575 = vunpack.c.l.b16 %v504
    %v576 = vunpack.c.l.b16 %v505
    %v577 = vunpack.c.l.b16 %v506
    %v578 = vunpack.c.l.b16 %v507
    %v579 = vunpack.c.l.b16 %v508
    %v580 = vunpack.c.l.b16 %v509
    %v581 = vunpack.c.l.b16 %v510
    %v582 = vunpack.c.l.b16 %v511
    %v583 = vunpack.c.l.b16 %v512
    %v584 = vunpack.c.l.b16 %v513
    %v585 = vunpack.c.l.b16 %v514
    %v586 = vunpack.c.l.b16 %v515
    %v587 = vpack.c.b16 %v556, %v555
    %v588 = vpack.c.b16 %v558, %v557
    %v589 = vpack.c.b16 %v560, %v559
    %v590 = vpack.c.b16 %v562, %v561
    %v591 = vpack.c.b16 %v564, %v563
    %v592 = vpack.c.b16 %v566, %v565
    %v593 = vpack.c.b16 %v568, %v567
    %v594 = vpack.c.b16 %v570, %v569
    %v595 = vpack.c.b16 %v572, %v571
    %v596 = vpack.c.b16 %v574, %v573
    %v597 = vpack.c.b16 %v576, %v575
    %v598 = vpack.c.b16 %v578, %v577
    %v599 = vpack.c.b16 %v580, %v579
    %v600 = vpack.c.b16 %v582, %v581
    %v601 = vpack.c.b16 %v584, %v583
    %v602 = vpack.c.b16 %v586, %v585
    %619 = vmatprep.subr.bf16.mxu0 0
    %620 = vmatpush1.bf16.msra.mxu0 %v594
    %621 = vmatprep.subr.bf16.mxu0 0
    %622 = vmatpush1.bf16.msra.mxu0 %v593
    %623 = vmatprep.subr.bf16.mxu0 0
    %624 = vmatpush1.bf16.msra.mxu0 %v592
    %625 = vmatprep.subr.bf16.mxu0 0
    %626 = vmatpush1.bf16.msra.mxu0 %v591
    %627 = vmatprep.subr.bf16.mxu0 0
    %628 = vmatpush1.bf16.msra.mxu0 %v590
    %629 = vmatprep.subr.bf16.mxu0 0
    %630 = vmatpush1.bf16.msra.mxu0 %v589
    %631 = vmatprep.subr.bf16.mxu0 0
    %632 = vmatpush1.bf16.msra.mxu0 %v588
    %633 = vmatprep.subr.bf16.mxu0 0
    %634 = vmatpush1.bf16.msra.mxu0 %v587
    %635 = vmatprep.subr.bf16.mxu0 0
    %636 = vmatpush2.bf16.msra.mxu0 %v602
    %637 = vmatprep.subr.bf16.mxu0 0
    %638 = vmatpush2.bf16.msra.mxu0 %v601
    %639 = vmatprep.subr.bf16.mxu0 0
    %640 = vmatpush2.bf16.msra.mxu0 %v600
    %641 = vmatprep.subr.bf16.mxu0 0
    %642 = vmatpush2.bf16.msra.mxu0 %v599
    %643 = vmatprep.subr.bf16.mxu0 0
    %644 = vmatpush2.bf16.msra.mxu0 %v598
    %645 = vmatprep.subr.bf16.mxu0 0
    %646 = vmatpush2.bf16.msra.mxu0 %v597
    %647 = vmatprep.subr.bf16.mxu0 0
    %648 = vmatpush2.bf16.msra.mxu0 %v596
    %649 = vmatprep.subr.bf16.mxu0 0
    %650 = vmatpush2.bf16.msra.mxu0 %v595
    %651 = vmatprep.mubr.bf16.mxu0 %v483
    %652 = vmatmul.mubr.bf16.gmra.mxu0 %v482
    %v653 = vpop.f32.mrf.mxu0
    %v654 = vadd.f32 %v521, %v653
    %v655 = vpop.f32.mrf.mxu0
    %v656 = vpop.f32.mrf.mxu0
    %v657 = vadd.f32 %v521, %v656
    %v658 = vpop.f32.mrf.mxu0
    %659 = vdwg.mxu0
    %v660 = vtanh.pop %v654
    %v661 = vtanh.pop %v657
    %662 = vst [vmem:[#allocation8] sm:$0xff] %v660
    %663 = vst [vmem:[#allocation8 + $0x8] sm:$0xff] %v661
    // Predicated region
    $region50: #{tpu_custom_call.1} parent=1 // pred_check
      _
    $region51: #{tpu_custom_call.1} parent=1 // pred_check_branch
      %665 = sbr.rel (0) target = $region53
    $region52: #{tpu_custom_call.1} parent=1 // pred_region
      %s667 = ssub.s32 256, 256
      %668 = vsyncadd [#allocation4], %s667
      %s669 = sshll.u32 [#allocation8], 4
      %s670 = int_to_ptr.vmem [resolvable:$true] %s669
      %675 = dma.vmem_to_hbm [thread:$0]  %s670, 256, %s9, [#allocation4], 128, 128, 8
    $region53: #{tpu_custom_call.1} parent=1 // pred_fallthru
      _
    // Predicated region
    $region54: #{tpu_custom_call.1} parent=1 // pred_check
      _
    $region55: #{tpu_custom_call.1} parent=1 // pred_check_branch
      %677 = sbr.rel (0) target = $region57
    $region56: #{tpu_custom_call.1} parent=1 // pred_region
      %678 = dma.done [#allocation4], 256
    $region57: #{tpu_custom_call.1} parent=1 // pred_fallthru
      _
    %679 = vsyncpa [#allocation3], 1
    %680 = vsyncpa [#allocation6], 1
    %681 = vsyncpa [#allocation4], 1

</llo_original>
